<compile_context>
chip_gen: v7x
topology: tpu7x:2x2x1
jax: 0.10.0
libtpu: 0.0.40
codegen_flags: <defaults>
</compile_context>

<pallas_src>
import jax
import jax.numpy as jnp
from jax.experimental import pallas as pl
from jax.experimental.pallas import tpu as pltpu


def _round_up(x, m):
    return ((x + m - 1) // m) * m


# ---------------------------------------------------------------------------
# Kernels
# ---------------------------------------------------------------------------
def bow_fc2_resident_kernel(x_ref, w2_ref, b2_ref, out_ref):
    """out = x @ w2 + b2 with w2 fully VMEM-resident (single K step)."""
    out_ref[...] = (
        jnp.dot(x_ref[...], w2_ref[...], preferred_element_type=jnp.float32)
        + b2_ref[...]
    ).astype(out_ref.dtype)


def bow_fc2_ktiled_kernel(x_ref, w2_ref, b2_ref, out_ref, acc_ref):
    """K-tiled fallback for very large In; bias folded into acc init."""
    k = pl.program_id(1)

    @pl.when(k == 0)
    def _():
        acc_ref[...] = jnp.broadcast_to(b2_ref[...], acc_ref.shape)

    acc_ref[...] += jnp.dot(
        x_ref[...], w2_ref[...], preferred_element_type=jnp.float32
    )

    @pl.when(k == pl.num_programs(1) - 1)
    def _():
        out_ref[...] = acc_ref[...].astype(out_ref.dtype)


# ---------------------------------------------------------------------------
# One-time parameter preparation (hoisted out of the forward path)
# ---------------------------------------------------------------------------
_KTILE = 2048  # K tile for the non-resident fallback


def prepare_bow_fc2_params(w2_t, b2, *, resident_weight_budget=8 << 20):
    """Pad/cast fc2 params once.

    w2_t: [In, L]   fc2 weight, pre-transposed so the kernel does x @ W.
    b2:   [1, L] or [L]
    Returns (w2_p [Inp, Lp] bf16, b2_p [1, Lp] f32, meta).
    """
    In, L = w2_t.shape
    Lp = _round_up(max(L, 128), 128)                # lane-dense output columns
    resident = In * Lp * 2 <= resident_weight_budget
    Inp = In if resident else _round_up(In, _KTILE)
    w2_p = (
        jnp.zeros((Inp, Lp), jnp.bfloat16)
        .at[:In, :L]
        .set(w2_t.astype(jnp.bfloat16))
    )
    b2_p = jnp.zeros((1, Lp), jnp.float32).at[:, :L].set(
        jnp.asarray(b2, jnp.float32).reshape(1, L)
    )
    meta = dict(in_features=In, num_labels=L, resident=resident)
    return w2_p, b2_p, meta


# ---------------------------------------------------------------------------
# Forward
# ---------------------------------------------------------------------------
def bow_classifier_forward(x, w2_p, b2_p, meta, *, vmem_budget=24 << 20):
    """BOWClassifier.forward: returns fc2(x) = x @ W2^T + b2."""
    B, In = x.shape
    Inp, Lp = w2_p.shape
    L = meta["num_labels"]
    assert In == meta["in_features"]

    # Stream x as bf16 (cast once here, not per step inside the kernel).
    x = x.astype(jnp.bfloat16)

    # ---- batch tiling, sized against v7x's 64 MiB VMEM (worst case) ------
    Bp8 = _round_up(B, 8)
    if meta["resident"]:
        w2_bytes = Inp * Lp * 2
        per_row = 2 * Inp * 2 + 2 * Lp * 4          # dbl-buf bf16 x + f32 out
        tb_cap = max(8, ((vmem_budget - w2_bytes) // per_row) // 8 * 8)
        tk = Inp
    else:
        tk = min(Inp, _KTILE)
        w2_tile_bytes = 2 * tk * Lp * 2
        per_row = 2 * tk * 2 + 2 * Lp * 4 + Lp * 4  # + f32 accumulator row
        tb_cap = max(8, ((vmem_budget - w2_tile_bytes) // per_row) // 8 * 8)

    tb = max(8, (min(tb_cap, 512, Bp8) // 8) * 8)
    # v7x megacore: keep >=2 batch grid steps when the batch allows it.
    if Bp8 >= 16 and Bp8 <= tb:
        tb = max(8, _round_up((Bp8 + 1) // 2, 8))
    Bp = _round_up(Bp8, tb)

    # ---- pad x only when actually required --------------------------------
    if Bp != B or Inp != In:
        x_p = jnp.zeros((Bp, Inp), jnp.bfloat16).at[:B, :In].set(x)
    else:
        x_p = x

    if meta["resident"]:
        out_p = pl.pallas_call(
            bow_fc2_resident_kernel,
            out_shape=jax.ShapeDtypeStruct((Bp, Lp), jnp.float32),
            grid_spec=pltpu.PrefetchScalarGridSpec(
                num_scalar_prefetch=0,
                grid=(Bp // tb,),
                in_specs=[
                    pl.BlockSpec((tb, Inp), lambda i: (i, 0)),   # x row tile
                    pl.BlockSpec((Inp, Lp), lambda i: (0, 0)),   # resident w2
                    pl.BlockSpec((1, Lp), lambda i: (0, 0)),     # bias
                ],
                out_specs=pl.BlockSpec((tb, Lp), lambda i: (i, 0)),
            ),
            compiler_params=pltpu.CompilerParams(
                dimension_semantics=("parallel",),
                vmem_limit_bytes=32 << 20,
            ),
        )(x_p, w2_p, b2_p)
    else:
        out_p = pl.pallas_call(
            bow_fc2_ktiled_kernel,
            out_shape=jax.ShapeDtypeStruct((Bp, Lp), jnp.float32),
            grid_spec=pltpu.PrefetchScalarGridSpec(
                num_scalar_prefetch=0,
                grid=(Bp // tb, Inp // tk),
                in_specs=[
                    pl.BlockSpec((tb, tk), lambda i, k: (i, k)),   # x tile
                    pl.BlockSpec((tk, Lp), lambda i, k: (k, 0)),   # w2 tile
                    pl.BlockSpec((1, Lp), lambda i, k: (0, 0)),    # bias
                ],
                out_specs=pl.BlockSpec((tb, Lp), lambda i, k: (i, 0)),
                scratch_shapes=[pltpu.VMEM((tb, Lp), jnp.float32)],
            ),
            compiler_params=pltpu.CompilerParams(
                dimension_semantics=("parallel", "arbitrary"),
                vmem_limit_bytes=32 << 20,
            ),
        )(x_p, w2_p, b2_p)

    return out_p[:B, :L]


# ---------------------------------------------------------------------------
# Deterministic init mimicking torch.nn.Linear: U(-1/sqrt(fan_in), +)
# ---------------------------------------------------------------------------
def init_linear_params(key, fan_in, fan_out):
    kw, kb = jax.random.split(key)
    bound = 1.0 / jnp.sqrt(jnp.asarray(fan_in, jnp.float32))
    # Stored already transposed: [fan_in, fan_out] so kernel does x @ W.
    w_t = jax.random.uniform(kw, (fan_in, fan_out), jnp.float32, -bound, bound)
    b = jax.random.uniform(kb, (1, fan_out), jnp.float32, -bound, bound)
    return w_t, b


if __name__ == "__main__":
    batch = 8
    input_size = 32
    hidden_size = 16   # fc1 exists in the module but its output is unused
    num_labels = 4

    root = jax.random.PRNGKey(0)
    kx, k1, k2 = jax.random.split(root, 3)

    x = jax.random.normal(kx, (batch, input_size), jnp.float32)
    _w1_t, _b1 = init_linear_params(k1, input_size, hidden_size)  # fc1 (dead)
    w2_t, b2 = init_linear_params(k2, input_size, num_labels)     # fc2

    # One-time parameter prep (padding + bf16 cast hoisted out of forward).
    w2_p, b2_p, meta = prepare_bow_fc2_params(w2_t, b2)

    out = bow_classifier_forward(x, w2_p, b2_p, meta)
    out = jax.block_until_ready(out)

    # Reference with matching MXU dtypes (bf16 operands, f32 accumulate).
    ref = (
        jnp.dot(
            x.astype(jnp.bfloat16),
            w2_t.astype(jnp.bfloat16),
            preferred_element_type=jnp.float32,
        )
        + b2
    )
    assert out.shape == (batch, num_labels)
    assert jnp.allclose(out, ref, atol=1e-2, rtol=1e-2)

    print("KERNEL_OK")
</pallas_src>

<mosaic_0001>
module attributes {stable_mosaic.version = 11 : i64} {
  func.func @bow_fc2_resident_kernel(%arg0: i32, %arg1: memref<8x32xbf16, #tpu.memory_space<vmem>>, %arg2: memref<32x128xbf16, #tpu.memory_space<vmem>>, %arg3: memref<1x128xf32, #tpu.memory_space<vmem>>, %arg4: memref<8x128xf32, #tpu.memory_space<vmem>>) attributes {dimension_semantics = [#tpu.dimension_semantics<parallel>], iteration_bounds = array<i64: 1>, scalar_prefetch = 0 : i64, scratch_operands = 0 : i64, tpu.core_type = #tpu.core_type<tc>, window_params = [{transform_indices = @transform_0, window_bounds = array<i64: 8, 32>}, {pipeline_mode = #tpu.pipeline_mode<synchronous>, transform_indices = @transform_1, window_bounds = array<i64: 32, 128>}, {pipeline_mode = #tpu.pipeline_mode<synchronous>, transform_indices = @transform_2, window_bounds = array<i64: 1, 128>}, {transform_indices = @transform_3, window_bounds = array<i64: 8, 128>}]} {
    %c0 = arith.constant 0 : index
    %c0_0 = arith.constant 0 : index
    %0 = vector.load %arg1[%c0, %c0_0] : memref<8x32xbf16, #tpu.memory_space<vmem>>, vector<8x32xbf16>
    %c0_1 = arith.constant 0 : index
    %c0_2 = arith.constant 0 : index
    %1 = vector.load %arg2[%c0_1, %c0_2] : memref<32x128xbf16, #tpu.memory_space<vmem>>, vector<32x128xbf16>
    %cst = arith.constant dense<0.000000e+00> : vector<8x128xf32>
    %2 = tpu.matmul %0, %1, %cst {dimension_numbers = #tpu.dot_dimension_numbers<[1], [0], [0], [1], [0, 0, 1, 1], [], []>} : vector<8x32xbf16>, vector<32x128xbf16>, vector<8x128xf32> -> vector<8x128xf32>
    %c0_3 = arith.constant 0 : index
    %c0_4 = arith.constant 0 : index
    %3 = vector.load %arg3[%c0_3, %c0_4] : memref<1x128xf32, #tpu.memory_space<vmem>>, vector<1x128xf32>
    %4 = vector.broadcast %3 : vector<1x128xf32> to vector<8x128xf32>
    %5 = arith.addf %2, %4 : vector<8x128xf32>
    %c0_5 = arith.constant 0 : index
    %c0_6 = arith.constant 0 : index
    %6 = vector.load %arg4[%c0_5, %c0_6] : memref<8x128xf32, #tpu.memory_space<vmem>>, vector<8x128xf32>
    tpu.vector_store %arg4[%c0_5, %c0_6], %5 {strides = array<i32>} : memref<8x128xf32, #tpu.memory_space<vmem>>, vector<8x128xf32>,
    return
  }
  func.func @transform_0(%arg0: i32) -> (i32, i32) {
    %c0_i32 = arith.constant 0 : i32
    %c0_i32_0 = arith.constant 0 : i32
    return %arg0, %c0_i32 : i32, i32
  }
  func.func @transform_1(%arg0: i32) -> (i32, i32) {
    %c0_i32 = arith.constant 0 : i32
    %c0_i32_0 = arith.constant 0 : i32
    %c0_i32_1 = arith.constant 0 : i32
    return %c0_i32, %c0_i32_0 : i32, i32
  }
  func.func @transform_2(%arg0: i32) -> (i32, i32) {
    %c0_i32 = arith.constant 0 : i32
    %c0_i32_0 = arith.constant 0 : i32
    %c0_i32_1 = arith.constant 0 : i32
    return %c0_i32, %c0_i32_0 : i32, i32
  }
  func.func @transform_3(%arg0: i32) -> (i32, i32) {
    %c0_i32 = arith.constant 0 : i32
    %c0_i32_0 = arith.constant 0 : i32
    return %arg0, %c0_i32 : i32, i32
  }
}

</mosaic_0001>

<llo_original>
// kernel: tpu_custom_call.1
$region0: #{tpu_custom_call.1}
  #allocation0 [shape = 'u32[]', space=smem, size = 0x4, offset = 0x4, fixed_abs, tag = 'smem constant byte address 0x4 - core index']
  #allocation1 [shape = 'u32[144,128]{1,0:T(1,128)}', space=vmem, size = 0x12000, scoped, tag = 'internal scratch']
  %s0 = inlined_call_operand.hbm [shape: bf16[8,32], index: 0, kind: input, shape index: {}]
  %s1 = inlined_call_operand.hbm [shape: bf16[32,128], index: 1, kind: input, shape index: {}]
  %s2 = inlined_call_operand.vmem [shape: f32[1,128], index: 2, kind: input, shape index: {}]
  %s3 = inlined_call_operand.hbm [shape: f32[8,128], index: 3, kind: output, shape index: {}]
  %s4 = sld [smem:[#allocation0]]
  $region30: #{tpu_custom_call.1} parent=0
    _
  %s6 = ssub.s32 1, %s4
  %s7 = scalar_select 0, %s6, %s4
  $region1: #{tpu_custom_call.1} parent=0
    #allocation2 [shape = 'u8[2048]{0}', space=vmem, size = 0x800, scoped, tag = 'input window, operand 0, single buffered']
    #allocation3 [shape = 's32[1]{0}', space=sflag, size = 0x4, scoped, tag = 'scoped memory for tpu_custom_call.1']
    #allocation4 [shape = 's32[1]{0}', space=sflag, size = 0x4, scoped, tag = 'scoped memory for tpu_custom_call.1']
    #allocation5 [shape = 'u8[8192]{0}', space=vmem, size = 0x2000, scoped, tag = 'input window, operand 1, single buffered']
    #allocation6 [shape = 's32[1]{0}', space=sflag, size = 0x4, scoped, tag = 'scoped memory for tpu_custom_call.1']
    #allocation7 [shape = 'u8[4096]{0}', space=vmem, size = 0x1000, scoped, tag = 'output window, operand 0, single buffered']
    %8 = vsyncpa [#allocation3], 0
    %9 = vsyncpa [#allocation6], 0
    %10 = vsyncpa [#allocation4], 0
    // Predicated region
    $region2: #{tpu_custom_call.1} parent=1 // pred_check
      _
    $region3: #{tpu_custom_call.1} parent=1 // pred_check_branch
      %12 = sbr.rel (0) target = $region5
    $region4: #{tpu_custom_call.1} parent=1 // pred_region
      %s14 = ssub.s32 64, 64
      %15 = vsyncadd [#allocation3], %s14
      %s17 = sshll.u32 [#allocation2], 4
      %s18 = int_to_ptr.vmem [resolvable:$true] %s17
      %20 = dma.hbm_to_vmem [thread:$0]  %s0, 64, %s18, [#allocation3]
    $region5: #{tpu_custom_call.1} parent=1 // pred_fallthru
      _
    // Predicated region
    $region6: #{tpu_custom_call.1} parent=1 // pred_check
      _
    $region7: #{tpu_custom_call.1} parent=1 // pred_check_branch
      %22 = sbr.rel (0) target = $region9
    $region8: #{tpu_custom_call.1} parent=1 // pred_region
      %s24 = ssub.s32 256, 256
      %25 = vsyncadd [#allocation6], %s24
      %s26 = sshll.u32 [#allocation5], 4
      %s27 = int_to_ptr.vmem [resolvable:$true] %s26
      %32 = dma.hbm_to_vmem [thread:$0]  %s1, 256, %s27, [#allocation6], 64, 64, 4
    $region9: #{tpu_custom_call.1} parent=1 // pred_fallthru
      _
    // Predicated region
    $region10: #{tpu_custom_call.1} parent=1 // pred_check
      _
    $region11: #{tpu_custom_call.1} parent=1 // pred_check_branch
      %34 = sbr.rel (0) target = $region13
    $region12: #{tpu_custom_call.1} parent=1 // pred_region
      _
    $region13: #{tpu_custom_call.1} parent=1 // pred_fallthru
      _
    // Predicated region
    $region14: #{tpu_custom_call.1} parent=1 // pred_check
      _
    $region15: #{tpu_custom_call.1} parent=1 // pred_check_branch
      %36 = sbr.rel (0) target = $region17
    $region16: #{tpu_custom_call.1} parent=1 // pred_region
      %37 = dma.done [#allocation3], 64
    $region17: #{tpu_custom_call.1} parent=1 // pred_fallthru
      _
    // Predicated region
    $region18: #{tpu_custom_call.1} parent=1 // pred_check
      _
    $region19: #{tpu_custom_call.1} parent=1 // pred_check_branch
      %39 = sbr.rel (0) target = $region21
    $region20: #{tpu_custom_call.1} parent=1 // pred_region
      %40 = dma.done [#allocation6], 256
    $region21: #{tpu_custom_call.1} parent=1 // pred_fallthru
      _
    %v42 = vld [vmem:[#allocation2] sm:$0xf]
    %v43 = vld [vmem:[#allocation5] sm:$0xf]
    %v44 = vld [vmem:[#allocation5 + $0x4] sm:$0xf]
    %v45 = vld [vmem:[#allocation5 + $0x8] sm:$0xf]
    %v46 = vld [vmem:[#allocation5 + $0xc] sm:$0xf]
    %v47 = vld [vmem:[%s2] sm:$0x1]
    %v49 = vlaneseq
    %v50 = vshrl.u32 %v49, 7
    %v51 = vsub.s32 0, %v50
    %v52 = vrot.slane %v47, %v51
    %v58 = vunpack.c.l.b16 %v43
    %v59 = vunpack.c.l.b16 %v44
    %v60 = vunpack.c.l.b16 %v45
    %v61 = vunpack.c.l.b16 %v46
    %v62 = vpack.c.b16 %v59, %v58
    %v63 = vpack.c.b16 %v61, %v60
    %vm66 = vcmask 261120
    %v68 = vsel %vm66, %v42, 0
    %70 = vmatprep.subr.bf16.mxu0 0
    %71 = vmatpush1.bf16.msra.mxu0 %v62
    %72 = vmatprep.subr.bf16.mxu0 0
    %73 = vmatpush1.bf16.msra.mxu0 %v63
    %74 = vmatprep.subr.bf16.mxu0 0
    %75 = vmatpush1.bf16.msra.mxu0 0
    %76 = vmatprep.subr.bf16.mxu0 0
    %77 = vmatpush1.bf16.msra.mxu0 0
    %78 = vmatprep.subr.bf16.mxu0 0
    %79 = vmatpush1.bf16.msra.mxu0 0
    %80 = vmatprep.subr.bf16.mxu0 0
    %81 = vmatpush1.bf16.msra.mxu0 0
    %82 = vmatprep.subr.bf16.mxu0 0
    %83 = vmatpush1.bf16.msra.mxu0 0
    %84 = vmatprep.subr.bf16.mxu0 0
    %85 = vmatpush1.bf16.msra.mxu0 0
    %86 = vmatprep.subr.bf16.mxu0 0
    %87 = vmatpush1.bf16.msra.mxu0 0
    %88 = vmatprep.subr.bf16.mxu0 0
    %89 = vmatpush1.bf16.msra.mxu0 0
    %90 = vmatprep.subr.bf16.mxu0 0
    %91 = vmatpush1.bf16.msra.mxu0 0
    %92 = vmatprep.subr.bf16.mxu0 0
    %93 = vmatpush1.bf16.msra.mxu0 0
    %94 = vmatprep.subr.bf16.mxu0 0
    %95 = vmatpush1.bf16.msra.mxu0 0
    %96 = vmatprep.subr.bf16.mxu0 0
    %97 = vmatpush1.bf16.msra.mxu0 0
    %98 = vmatprep.subr.bf16.mxu0 0
    %99 = vmatpush1.bf16.msra.mxu0 0
    %100 = vmatprep.subr.bf16.mxu0 0
    %101 = vmatpush1.bf16.msra.mxu0 0
    %102 = vmatprep.mubr.bf16.mxu0 0
    %103 = vmatmul.mubr.bf16.gmra.mrb[0].mxu0 %v68
    %v104 = vpop.f32.mrb[0].mxu0
    %v105 = vadd.f32 %v52, %v104
    %v106 = vpop.f32.mrb[0].mxu0
    %v107 = vpop.f32.mrb[0].mxu0
    %v108 = vpop.f32.mrb[0].mxu0
    %109 = vdwg.mxu0
    %110 = vst [vmem:[#allocation7] sm:$0xff] %v105
    // Predicated region
    $region22: #{tpu_custom_call.1} parent=1 // pred_check
      _
    $region23: #{tpu_custom_call.1} parent=1 // pred_check_branch
      %112 = sbr.rel (0) target = $region25
    $region24: #{tpu_custom_call.1} parent=1 // pred_region
      %s114 = ssub.s32 128, 128
      %115 = vsyncadd [#allocation4], %s114
      %s117 = sshll.u32 [#allocation7], 4
      %s118 = int_to_ptr.vmem [resolvable:$true] %s117
      %120 = dma.vmem_to_hbm [thread:$0]  %s118, 128, %s3, [#allocation4]
    $region25: #{tpu_custom_call.1} parent=1 // pred_fallthru
      _
    // Predicated region
    $region26: #{tpu_custom_call.1} parent=1 // pred_check
      _
    $region27: #{tpu_custom_call.1} parent=1 // pred_check_branch
      %122 = sbr.rel (0) target = $region29
    $region28: #{tpu_custom_call.1} parent=1 // pred_region
      %123 = dma.done [#allocation4], 128
    $region29: #{tpu_custom_call.1} parent=1 // pred_fallthru
      _
    %124 = vsyncpa [#allocation3], 1
    %125 = vsyncpa [#allocation6], 1
    %126 = vsyncpa [#allocation4], 1

</llo_original>
